<compile_context>
chip_gen: v7x
topology: tpu7x:2x2x1
jax: 0.10.0
libtpu: 0.0.40
codegen_flags: <defaults>
</compile_context>

<pallas_src>
import functools

import jax
import jax.numpy as jnp
from jax.experimental import pallas as pl
from jax.experimental.pallas import tpu as pltpu

_MIB = 1024 * 1024


def _cdiv(a: int, b: int) -> int:
    return -(-a // b)


def _round_up(x: int, m: int) -> int:
    return _cdiv(x, m) * m


def _vmem_capacity_bytes() -> int:
    """Per-core VMEM capacity; conservative fallback off-TPU (interpret mode)."""
    try:
        return int(getattr(pltpu.get_tpu_info(), "vmem_capacity_bytes"))
    except Exception:
        return 64 * _MIB  # v7x per-TensorCore VMEM (smallest of v5e/v6e/v7x)


def _dropout_threshold(p: float) -> int:
    """Keep iff hash_bits >= thr  =>  P(keep) = 1 - p (to within 2^-32)."""
    return min(int(round(p * 2.0 ** 32)), 2 ** 32 - 1)


def _keep_mask(seed_u32, rows_u32, cols_u32, thr: int):
    """Stateless counter-based keep-mask: pure uint32 hash of the logical
    element position.  Independent of tiling; runs on plain VPU integer ops
    (no pltpu.prng_* primitives, so it also lowers in interpret mode)."""
    bits = seed_u32 ^ (rows_u32 * jnp.uint32(0x9E3779B1)) ^ (cols_u32 * jnp.uint32(0x85EBCA77))
    bits = bits ^ (bits >> 16)
    bits = bits * jnp.uint32(0x7FEB352D)
    bits = bits ^ (bits >> 15)
    bits = bits * jnp.uint32(0x846CA68B)
    bits = bits ^ (bits >> 16)
    return bits >= jnp.uint32(thr)


def _ffn_kernel_factory(dropout_p: float, multi_chunk: bool):
    """Build the FFN kernel body with statically-known dropout prob / layout."""
    train = dropout_p > 0.0
    if train:
        thr = _dropout_threshold(dropout_p)
        inv_keep = 1.0 / (1.0 - dropout_p)

    def _hidden(seed_ref, x_ref, w1_ref, b1_ref):
        # linear_1 chunk: (TM, D) @ (D, TF) on the MXU, f32 accumulation.
        h = jnp.dot(x_ref[...], w1_ref[...], preferred_element_type=jnp.float32)
        h = jnp.maximum(h + b1_ref[...], 0.0)          # bias + relu in f32
        if train:
            tm, tf = h.shape
            i = pl.program_id(0)
            j = pl.program_id(1)
            rows = (jax.lax.broadcasted_iota(jnp.int32, (tm, tf), 0)
                    + i * tm).astype(jnp.uint32)
            cols = (jax.lax.broadcasted_iota(jnp.int32, (tm, tf), 1)
                    + j * tf).astype(jnp.uint32)
            keep = _keep_mask(seed_ref[0].astype(jnp.uint32), rows, cols, thr)
            # NOTE: the 1/keep scale is applied ONCE to the (TM, D) result at
            # finalize time, not per (TM, TF) element here.
            h = jnp.where(keep, h, jnp.float32(0.0))
        return h

    if multi_chunk:
        def kernel(seed_ref, x_ref, w1_ref, b1_ref, w2_ref, b2_ref, o_ref, acc_ref):
            j = pl.program_id(1)

            @pl.when(j == 0)
            def _init():
                acc_ref[...] = jnp.zeros_like(acc_ref)

            h = _hidden(seed_ref, x_ref, w1_ref, b1_ref)
            # linear_2 partial: (TM, TF) @ (TF, D), accumulated in f32 scratch.
            acc_ref[...] += jnp.dot(h.astype(w2_ref.dtype), w2_ref[...],
                                    preferred_element_type=jnp.float32)

            @pl.when(j == pl.num_programs(1) - 1)
            def _finalize():
                acc = acc_ref[...]
                if train:
                    acc = acc * jnp.float32(inv_keep)
                o_ref[...] = (acc + b2_ref[...]).astype(o_ref.dtype)
    else:
        # Single d_ff chunk: no accumulator scratch, write the result directly.
        def kernel(seed_ref, x_ref, w1_ref, b1_ref, w2_ref, b2_ref, o_ref):
            h = _hidden(seed_ref, x_ref, w1_ref, b1_ref)
            out = jnp.dot(h.astype(w2_ref.dtype), w2_ref[...],
                          preferred_element_type=jnp.float32)
            if train:
                out = out * jnp.float32(inv_keep)
            o_ref[...] = (out + b2_ref[...]).astype(o_ref.dtype)

    return kernel


def _pick_tiles(N, D, d_ff, x_isz, w_isz, out_isz, max_ff_chunk):
    vmem_cap = _vmem_capacity_bytes()
    # Use most of the physical VMEM (112 MiB on 128-MiB v5e/v6e, ~56 MiB on
    # 64-MiB v7x) but always leave headroom for Mosaic internal scratch.
    vmem_limit = max(min(vmem_cap - 8 * _MIB, 112 * _MIB), 32 * _MIB)

    # Row tile: weights are re-streamed from HBM once per row tile, so bigger
    # TM => higher arithmetic intensity vs. weight traffic.  Cap at 512, but
    # keep >= 2 row tiles so the "parallel" axis spans both v7x TensorCores
    # (and megacore on v5e/v6e) even for small N.
    TM = min(512, _round_up(N, 8))
    if N > 8 and _cdiv(N, TM) < 2:
        TM = max(8, _round_up(_cdiv(N, 2), 8))
    grid_m = _cdiv(N, TM)

    # d_ff chunk: largest chunk whose FULL working set fits the VMEM budget
    # (double-buffered x/out tiles + f32 accumulator + f32 h + weight chunks,
    # with the weight term sized from the weight dtype, not x's).
    fixed = (2 * TM * D * x_isz        # x row tile, double-buffered
             + 2 * TM * D * out_isz    # output tile, double-buffered
             + TM * D * 4              # f32 accumulator scratch
             + 2 * D * 4)              # resident f32 b2
    per_tf = 4 * D * w_isz + TM * 4 + 8  # w1+w2 chunks (x2 buffers) + f32 h + b1
    budget = max((vmem_limit - 2 * _MIB - fixed) // per_tf, 128)
    cap = budget if max_ff_chunk is None else min(budget, max_ff_chunk)

    if d_ff <= cap:
        TF = d_ff                      # single chunk: accumulator-free path
    else:
        TF = d_ff                      # fallback for exotic d_ff values
        # Prefer 256-multiples (v6e/v7x MXUs are 2x256^2); 128 only as a floor.
        for c in (2048, 1024, 512, 256, 128):
            if c <= cap and d_ff % c == 0:
                TF = c
                break
    grid_f = d_ff // TF
    return TM, TF, grid_m, grid_f, int(vmem_limit)


@functools.partial(jax.jit,
                   static_argnames=("dropout_p", "compute_dtype", "max_ff_chunk"))
def feed_forward_block(x, w1_t, b1, w2_t, b2, seed=0, *, dropout_p: float = 0.0,
                       compute_dtype=None, max_ff_chunk=None):
    """x: (B, S, d_model)
       w1_t: (d_model, d_ff), b1: (d_ff,)    -- linear_1 in (in, out) layout
       w2_t: (d_ff, d_model), b2: (d_model,) -- linear_2 in (in, out) layout
       seed: int32 scalar for the dropout hash (ignored when dropout_p == 0)
       compute_dtype: optionally feed the MXU e.g. bf16 operands (f32 accum)
       max_ff_chunk: optional cap on the d_ff chunk (testing / tuning)."""
    B, S, D = x.shape
    d_ff = w1_t.shape[1]
    N = B * S
    out_dtype = x.dtype

    if compute_dtype is not None:
        # MXU throughput mode (bf16 runs far faster than f32 on v5e/v6e/v7x
        # and halves weight HBM traffic); accumulation stays f32 in-kernel.
        x = x.astype(compute_dtype)
        w1_t = w1_t.astype(compute_dtype)
        w2_t = w2_t.astype(compute_dtype)

    x2 = x.reshape(N, D)
    b1r = b1.reshape(1, d_ff).astype(jnp.float32)
    b2r = b2.reshape(1, D).astype(jnp.float32)
    seed_arr = jnp.reshape(jnp.asarray(seed, dtype=jnp.int32), (1,))

    TM, TF, grid_m, grid_f, vmem_limit = _pick_tiles(
        N, D, d_ff,
        jnp.dtype(x2.dtype).itemsize,
        jnp.dtype(w1_t.dtype).itemsize,
        jnp.dtype(out_dtype).itemsize,
        max_ff_chunk)
    multi_chunk = grid_f > 1

    out = pl.pallas_call(
        _ffn_kernel_factory(dropout_p, multi_chunk),
        out_shape=jax.ShapeDtypeStruct((N, D), out_dtype),
        grid_spec=pltpu.PrefetchScalarGridSpec(
            num_scalar_prefetch=1,                        # dropout seed in SMEM
            grid=(grid_m, grid_f),
            in_specs=[
                pl.BlockSpec((TM, D), lambda i, j, s: (i, 0)),   # x row tile
                pl.BlockSpec((D, TF), lambda i, j, s: (0, j)),   # w1 chunk
                pl.BlockSpec((1, TF), lambda i, j, s: (0, j)),   # b1 chunk
                pl.BlockSpec((TF, D), lambda i, j, s: (j, 0)),   # w2 chunk
                pl.BlockSpec((1, D),  lambda i, j, s: (0, 0)),   # b2 (resident)
            ],
            out_specs=pl.BlockSpec((TM, D), lambda i, j, s: (i, 0)),
            scratch_shapes=([pltpu.VMEM((TM, D), jnp.float32)]   # f32 accumulator
                            if multi_chunk else []),
        ),
        compiler_params=pltpu.CompilerParams(
            dimension_semantics=("parallel", "arbitrary"),
            vmem_limit_bytes=vmem_limit,
        ),
    )(seed_arr, x2, w1_t, b1r, w2_t, b2r)
    return out.reshape(B, S, D)


def _init_linear(key, out_features, in_features):
    """Deterministic init matching nn.Linear default: U(-1/sqrt(in), 1/sqrt(in))."""
    kw, kb = jax.random.split(key)
    bound = 1.0 / (in_features ** 0.5)
    w = jax.random.uniform(kw, (out_features, in_features), jnp.float32, -bound, bound)
    b = jax.random.uniform(kb, (out_features,), jnp.float32, -bound, bound)
    return w, b


if __name__ == "__main__":
    d_model, d_ff, dropout = 128, 512, 0.1
    batch, seq = 2, 8

    key = jax.random.PRNGKey(0)
    kx, k1, k2 = jax.random.split(key, 3)

    x = jax.random.normal(kx, (batch, seq, d_model), jnp.float32)
    w1, b1 = _init_linear(k1, d_ff, d_model)     # linear_1: d_model -> d_ff (out, in)
    w2, b2 = _init_linear(k2, d_model, d_ff)     # linear_2: d_ff -> d_model (out, in)

    # Transpose ONCE at parameter-setup time to (in, out) layout.
    w1_t = jnp.asarray(w1.T)                     # (d_model, d_ff)
    w2_t = jnp.asarray(w2.T)                     # (d_ff, d_model)

    # --- eval path (dropout off), single-chunk / accumulator-free pipeline ---
    out = jax.block_until_ready(
        feed_forward_block(x, w1_t, b1, w2_t, b2, 0, dropout_p=0.0))
    ref = jnp.maximum(x @ w1.T + b1, 0.0) @ w2.T + b2
    assert out.shape == (batch, seq, d_model)
    assert jnp.allclose(out, ref, atol=1e-4, rtol=1e-4), \
        float(jnp.max(jnp.abs(out - ref)))

    # --- eval path again, forcing the multi-chunk f32-accumulator pipeline ---
    out_mc = jax.block_until_ready(
        feed_forward_block(x, w1_t, b1, w2_t, b2, 0, dropout_p=0.0, max_ff_chunk=256))
    assert jnp.allclose(out_mc, ref, atol=1e-4, rtol=1e-4), \
        float(jnp.max(jnp.abs(out_mc - ref)))

    # --- training path: stateless hash dropout, checked against a pure-JAX ref ---
    # TODO(synk): torch's nn.Dropout RNG stream cannot be reproduced bit-exactly;
    # the mask here is a seed-keyed hash of logical element indices (same keep
    # probability, tiling-invariant).
    seed = 123
    out_do = jax.block_until_ready(
        feed_forward_block(x, w1_t, b1, w2_t, b2, seed,
                           dropout_p=dropout, max_ff_chunk=256))
    N = batch * seq
    rows = jnp.arange(N, dtype=jnp.uint32)[:, None]
    cols = jnp.arange(d_ff, dtype=jnp.uint32)[None, :]
    keep = _keep_mask(jnp.uint32(seed), rows, cols, _dropout_threshold(dropout))
    h_ref = jnp.maximum(x.reshape(N, d_model) @ w1.T + b1, 0.0)
    h_ref = jnp.where(keep, h_ref, 0.0) / (1.0 - dropout)
    ref_do = (h_ref @ w2.T + b2).reshape(batch, seq, d_model)
    assert out_do.shape == (batch, seq, d_model)
    assert bool(jnp.all(jnp.isfinite(out_do)))
    assert jnp.allclose(out_do, ref_do, atol=1e-3, rtol=1e-3), \
        float(jnp.max(jnp.abs(out_do - ref_do)))

    print("KERNEL_OK")
</pallas_src>

<mosaic_0001>
module attributes {stable_mosaic.version = 11 : i64} {
  func.func @kernel(%arg0: i32, %arg1: i32, %arg2: memref<1xi32, #tpu.memory_space<smem>>, %arg3: memref<8x128xf32, #tpu.memory_space<vmem>>, %arg4: memref<128x512xf32, #tpu.memory_space<vmem>>, %arg5: memref<1x512xf32, #tpu.memory_space<vmem>>, %arg6: memref<512x128xf32, #tpu.memory_space<vmem>>, %arg7: memref<1x128xf32, #tpu.memory_space<vmem>>, %arg8: memref<8x128xf32, #tpu.memory_space<vmem>>) attributes {dimension_semantics = [#tpu.dimension_semantics<parallel>, #tpu.dimension_semantics<arbitrary>], iteration_bounds = array<i64: 2, 1>, scalar_prefetch = 1 : i64, scratch_operands = 0 : i64, tpu.core_type = #tpu.core_type<tc>, window_params = [{transform_indices = @transform_0, window_bounds = array<i64: 8, 128>}, {transform_indices = @transform_1, window_bounds = array<i64: 128, 512>}, {transform_indices = @transform_2, window_bounds = array<i64: 1, 512>}, {transform_indices = @transform_3, window_bounds = array<i64: 512, 128>}, {pipeline_mode = #tpu.pipeline_mode<synchronous>, transform_indices = @transform_4, window_bounds = array<i64: 1, 128>}, {transform_indices = @transform_5, window_bounds = array<i64: 8, 128>}]} {
    %c0 = arith.constant 0 : index
    %c0_0 = arith.constant 0 : index
    %0 = vector.load %arg3[%c0, %c0_0] : memref<8x128xf32, #tpu.memory_space<vmem>>, vector<8x128xf32>
    %c0_1 = arith.constant 0 : index
    %c0_2 = arith.constant 0 : index
    %1 = vector.load %arg4[%c0_1, %c0_2] : memref<128x512xf32, #tpu.memory_space<vmem>>, vector<128x512xf32>
    %cst = arith.constant dense<0.000000e+00> : vector<8x512xf32>
    %2 = tpu.matmul %0, %1, %cst {dimension_numbers = #tpu.dot_dimension_numbers<[1], [0], [0], [1], [0, 0, 1, 1], [], []>} : vector<8x128xf32>, vector<128x512xf32>, vector<8x512xf32> -> vector<8x512xf32>
    %c0_3 = arith.constant 0 : index
    %c0_4 = arith.constant 0 : index
    %3 = vector.load %arg5[%c0_3, %c0_4] : memref<1x512xf32, #tpu.memory_space<vmem>>, vector<1x512xf32>
    %4 = vector.broadcast %3 : vector<1x512xf32> to vector<8x512xf32>
    %5 = arith.addf %2, %4 : vector<8x512xf32>
    %cst_5 = arith.constant 0.000000e+00 : f32
    %6 = vector.broadcast %cst_5 : f32 to vector<8x512xf32>
    %7 = arith.maximumf %5, %6 : vector<8x512xf32>
    %c0_6 = arith.constant 0 : index
    %c0_7 = arith.constant 0 : index
    %8 = vector.load %arg6[%c0_6, %c0_7] : memref<512x128xf32, #tpu.memory_space<vmem>>, vector<512x128xf32>
    %cst_8 = arith.constant dense<0.000000e+00> : vector<8x128xf32>
    %9 = tpu.matmul %7, %8, %cst_8 {dimension_numbers = #tpu.dot_dimension_numbers<[1], [0], [0], [1], [0, 0, 1, 1], [], []>} : vector<8x512xf32>, vector<512x128xf32>, vector<8x128xf32> -> vector<8x128xf32>
    %c0_9 = arith.constant 0 : index
    %c0_10 = arith.constant 0 : index
    %10 = vector.load %arg7[%c0_9, %c0_10] : memref<1x128xf32, #tpu.memory_space<vmem>>, vector<1x128xf32>
    %11 = vector.broadcast %10 : vector<1x128xf32> to vector<8x128xf32>
    %12 = arith.addf %9, %11 : vector<8x128xf32>
    %c0_11 = arith.constant 0 : index
    %c0_12 = arith.constant 0 : index
    %13 = vector.load %arg8[%c0_11, %c0_12] : memref<8x128xf32, #tpu.memory_space<vmem>>, vector<8x128xf32>
    tpu.vector_store %arg8[%c0_11, %c0_12], %12 {strides = array<i32>} : memref<8x128xf32, #tpu.memory_space<vmem>>, vector<8x128xf32>,
    return
  }
  func.func @transform_0(%arg0: i32, %arg1: i32, %arg2: memref<1xi32, #tpu.memory_space<smem>>) -> (i32, i32) {
    %c0_i32 = arith.constant 0 : i32
    %c0_i32_0 = arith.constant 0 : i32
    return %arg0, %c0_i32 : i32, i32
  }
  func.func @transform_1(%arg0: i32, %arg1: i32, %arg2: memref<1xi32, #tpu.memory_space<smem>>) -> (i32, i32) {
    %c0_i32 = arith.constant 0 : i32
    %c0_i32_0 = arith.constant 0 : i32
    return %c0_i32, %arg1 : i32, i32
  }
  func.func @transform_2(%arg0: i32, %arg1: i32, %arg2: memref<1xi32, #tpu.memory_space<smem>>) -> (i32, i32) {
    %c0_i32 = arith.constant 0 : i32
    %c0_i32_0 = arith.constant 0 : i32
    return %c0_i32, %arg1 : i32, i32
  }
  func.func @transform_3(%arg0: i32, %arg1: i32, %arg2: memref<1xi32, #tpu.memory_space<smem>>) -> (i32, i32) {
    %c0_i32 = arith.constant 0 : i32
    %c0_i32_0 = arith.constant 0 : i32
    return %arg1, %c0_i32 : i32, i32
  }
  func.func @transform_4(%arg0: i32, %arg1: i32, %arg2: memref<1xi32, #tpu.memory_space<smem>>) -> (i32, i32) {
    %c0_i32 = arith.constant 0 : i32
    %c0_i32_0 = arith.constant 0 : i32
    %c0_i32_1 = arith.constant 0 : i32
    return %c0_i32, %c0_i32_0 : i32, i32
  }
  func.func @transform_5(%arg0: i32, %arg1: i32, %arg2: memref<1xi32, #tpu.memory_space<smem>>) -> (i32, i32) {
    %c0_i32 = arith.constant 0 : i32
    %c0_i32_0 = arith.constant 0 : i32
    return %arg0, %c0_i32 : i32, i32
  }
}

</mosaic_0001>

<llo_original>
// kernel: feed_forward_block.1
$region0: #{feed_forward_block.1}
  #allocation0 [shape = 'u32[]', space=smem, size = 0x4, offset = 0x4, fixed_abs, tag = 'smem constant byte address 0x4 - core index']
  #allocation1 [shape = 'u32[144,128]{1,0:T(1,128)}', space=vmem, size = 0x12000, scoped, tag = 'internal scratch']
  #allocation2 [shape = 's32[1]{0}', space=sflag, size = 0x4, scoped, tag = 'scoped memory for feed_forward_block.1']
  #allocation3 [shape = 's32[1]{0:T(128)S(6)}', space=smem, size = 0x200, scoped, tag = 'prefetched SMEM operand 0']
  %s0 = inlined_call_operand.<no memory space> [shape: s32[1], index: 0, kind: input, shape index: {}]
  %s1 = inlined_call_operand.vmem [shape: f32[16,128], index: 1, kind: input, shape index: {}]
  %s2 = inlined_call_operand.hbm [shape: f32[128,512], index: 2, kind: input, shape index: {}]
  %s3 = inlined_call_operand.vmem [shape: f32[1,512], index: 3, kind: input, shape index: {}]
  %s4 = inlined_call_operand.hbm [shape: f32[512,128], index: 4, kind: input, shape index: {}]
  %s5 = inlined_call_operand.vmem [shape: f32[1,128], index: 5, kind: input, shape index: {}]
  %s6 = inlined_call_operand.hbm [shape: f32[16,128], index: 6, kind: output, shape index: {}]
  %s7 = sld [smem:[#allocation0]]
  $region61: #{feed_forward_block.1} parent=0
    _
  %s9 = ssub.s32 1, %s7
  %s10 = scalar_select 0, %s9, %s7
  %11 = sst [smem:[#allocation3]] %s0
  $region1: #{feed_forward_block.1} parent=0
    #allocation4 [shape = 'u8[262144]{0}', space=vmem, size = 0x40000, scoped, tag = 'input window, operand 2, single buffered']
    #allocation5 [shape = 's32[2]{0}', space=sflag, size = 0x8, scoped, tag = 'scoped memory for feed_forward_block.1']
    #allocation6 [shape = 's32[2]{0}', space=sflag, size = 0x8, scoped, tag = 'scoped memory for feed_forward_block.1']
    #allocation7 [shape = 'u8[262144]{0}', space=vmem, size = 0x40000, scoped, tag = 'input window, operand 4, single buffered']
    #allocation8 [shape = 's32[1]{0}', space=sflag, size = 0x4, scoped, tag = 'scoped memory for feed_forward_block.1']
    #allocation9 [shape = 'u8[8192]{0}', space=vmem, size = 0x2000, scoped, tag = 'output window, operand 0']
    %12 = vsyncpa [#allocation5], 0
    %13 = vsyncpa [#allocation8], 0
    %14 = vsyncpa [#allocation6], 0
    %s15 = scalar_lea.sflag [#allocation6], 1
    %16 = vsyncpa %s15, 0
    loop: start=0, step=1, limit=4
    $region2: #{feed_forward_block.1} parent=1 // loop_pre_header
      _
    $region3: #{feed_forward_block.1} parent=1 // loop_header
      %s18 = sphi 0, %s22
      %p19 = scmp.ge.s32.totalorder %s18, 4
      %s25 = sphi 0, %s37
      %s26 = sphi 0, %s33
      %s27 = sphi 0, %s25
      %s28 = sphi 0, %s26
      %s29 = sphi 0, %s27
      %s30 = sphi 0, %s28
      %s40 = sphi 0, %s42
      %s43 = sphi 0, %s40
      %s44 = sphi 0, %s43
      %s60 = sphi 0, %s44
      %s66 = sphi 0, %s68
      %s69 = sphi 0, %s66
      %s70 = sphi 0, %s69
      %s86 = sphi 0, %s70
      %s92 = sphi 0, %s94
      %s95 = sphi 0, %s92
      %s96 = sphi 0, %s95
      %s112 = sphi 0, %s96
      %s118 = sphi 0, %s120
      %s121 = sphi 0, %s118
      %s122 = sphi 0, %s121
      %s138 = sphi 0, %s122
      %s142 = sphi 0, %s142
      %s144 = sphi 0, %s142
      %s145 = sphi 0, %s144
      %s159 = sphi 0, %s145
      %s165 = sphi 0, %s167
      %s168 = sphi 0, %s165
      %s169 = sphi 0, %s168
      %s185 = sphi 0, %s169
    $region4: #{feed_forward_block.1} parent=1 // loop_header_branch
      %21 = sbr.rel (%p19) target = $region8
    $region5: #{feed_forward_block.1} parent=1 // loop_body
      %s23 = ssub.s32 %s18, 1
      %s24 = ssub.s32 %s18, 2
      %s31 = sadd.s32 1, %s26
      %p32 = scmp.ge.s32.totalorder %s31, 1
      %s33 = scalar_select %p32, 0, %s31
      %s34 = sadd.s32 1, %s25
      %s35 = scalar_select %p32, %s34, %s25
      %p36 = scmp.ge.s32.totalorder %s35, 2
      %s37 = scalar_select %p36, 0, %s35
      %s38 = ssub.s32 %s25, %s37
      %p39 = scmp.eq.s32.totalorder %s38, 0
      %s41 = sadd.s32 %s40, 1
      %s42 = scalar_select %p39, %s40, %s41
      %p45 = pneg %p39
      %p46 = scmp.eq.s32.totalorder %s18, 1
      %p47 = por %p45, %p46
      %p48 = scmp.ne.s32.totalorder %s40, %s43
      %p49 = scmp.eq.s32.totalorder %s18, 0
      %p50 = por %p48, %p49
      %p51 = scmp.ne.s32.totalorder %s40, %s43
      %p52 = scmp.eq.s32.totalorder %s23, 1
      %p53 = por %p51, %p52
      %p54 = scmp.ne.s32.totalorder %s43, %s44
      %p55 = scmp.eq.s32.totalorder %s23, 0
      %p56 = por %p54, %p55
      %p57 = scmp.ne.s32.totalorder %s43, %s44
      %p58 = scmp.eq.s32.totalorder %s24, 1
      %p59 = por %p57, %p58
      %p61 = scmp.ne.s32.totalorder %s44, %s60
      %p62 = scmp.eq.s32.totalorder %s24, 0
      %p63 = por %p61, %p62
      %s64 = ssub.s32 %s26, %s33
      %p65 = scmp.eq.s32.totalorder %s64, 0
      %s67 = sadd.s32 %s66, 1
      %s68 = scalar_select %p65, %s66, %s67
      %p71 = pneg %p65
      %p72 = scmp.eq.s32.totalorder %s18, 1
      %p73 = por %p71, %p72
      %p74 = scmp.ne.s32.totalorder %s66, %s69
      %p75 = scmp.eq.s32.totalorder %s18, 0
      %p76 = por %p74, %p75
      %p77 = scmp.ne.s32.totalorder %s66, %s69
      %p78 = scmp.eq.s32.totalorder %s23, 1
      %p79 = por %p77, %p78
      %p80 = scmp.ne.s32.totalorder %s69, %s70
      %p81 = scmp.eq.s32.totalorder %s23, 0
      %p82 = por %p80, %p81
      %p83 = scmp.ne.s32.totalorder %s69, %s70
      %p84 = scmp.eq.s32.totalorder %s24, 1
      %p85 = por %p83, %p84
      %p87 = scmp.ne.s32.totalorder %s70, %s86
      %p88 = scmp.eq.s32.totalorder %s24, 0
      %p89 = por %p87, %p88
      %s90 = ssub.s32 %s26, %s33
      %p91 = scmp.eq.s32.totalorder %s90, 0
      %s93 = sadd.s32 %s92, 1
      %s94 = scalar_select %p91, %s92, %s93
      %p97 = pneg %p91
      %p98 = scmp.eq.s32.totalorder %s18, 1
      %p99 = por %p97, %p98
      %p100 = scmp.ne.s32.totalorder %s92, %s95
      %p101 = scmp.eq.s32.totalorder %s18, 0
      %p102 = por %p100, %p101
      %p103 = scmp.ne.s32.totalorder %s92, %s95
      %p104 = scmp.eq.s32.totalorder %s23, 1
      %p105 = por %p103, %p104
      %p106 = scmp.ne.s32.totalorder %s95, %s96
      %p107 = scmp.eq.s32.totalorder %s23, 0
      %p108 = por %p106, %p107
      %p109 = scmp.ne.s32.totalorder %s95, %s96
      %p110 = scmp.eq.s32.totalorder %s24, 1
      %p111 = por %p109, %p110
      %p113 = scmp.ne.s32.totalorder %s96, %s112
      %p114 = scmp.eq.s32.totalorder %s24, 0
      %p115 = por %p113, %p114
      %s116 = ssub.s32 %s26, %s33
      %p117 = scmp.eq.s32.totalorder %s116, 0
      %s119 = sadd.s32 %s118, 1
      %s120 = scalar_select %p117, %s118, %s119
      %p123 = pneg %p117
      %p124 = scmp.eq.s32.totalorder %s18, 1
      %p125 = por %p123, %p124
      %p126 = scmp.ne.s32.totalorder %s118, %s121
      %p127 = scmp.eq.s32.totalorder %s18, 0
      %p128 = por %p126, %p127
      %p129 = scmp.ne.s32.totalorder %s118, %s121
      %p130 = scmp.eq.s32.totalorder %s23, 1
      %p131 = por %p129, %p130
      %p132 = scmp.ne.s32.totalorder %s121, %s122
      %p133 = scmp.eq.s32.totalorder %s23, 0
      %p134 = por %p132, %p133
      %p135 = scmp.ne.s32.totalorder %s121, %s122
      %p136 = scmp.eq.s32.totalorder %s24, 1
      %p137 = por %p135, %p136
      %p139 = scmp.ne.s32.totalorder %s122, %s138
      %p140 = scmp.eq.s32.totalorder %s24, 0
      %p141 = por %p139, %p140
      %s143 = sadd.s32 %s142, 1
      %p146 = scmp.eq.s32.totalorder %s18, 1
      %p147 = scmp.ne.s32.totalorder %s142, %s144
      %p148 = scmp.eq.s32.totalorder %s18, 0
      %p149 = por %p147, %p148
      %p150 = scmp.ne.s32.totalorder %s142, %s144
      %p151 = scmp.eq.s32.totalorder %s23, 1
      %p152 = por %p150, %p151
      %p153 = scmp.ne.s32.totalorder %s144, %s145
      %p154 = scmp.eq.s32.totalorder %s23, 0
      %p155 = por %p153, %p154
      %p156 = scmp.ne.s32.totalorder %s144, %s145
      %p157 = scmp.eq.s32.totalorder %s24, 1
      %p158 = por %p156, %p157
      %p160 = scmp.ne.s32.totalorder %s145, %s159
      %p161 = scmp.eq.s32.totalorder %s24, 0
      %p162 = por %p160, %p161
      %s163 = ssub.s32 %s25, %s37
      %p164 = scmp.eq.s32.totalorder %s163, 0
      %s166 = sadd.s32 %s165, 1
      %s167 = scalar_select %p164, %s165, %s166
      %p170 = pneg %p164
      %p171 = scmp.eq.s32.totalorder %s18, 1
      %p172 = por %p170, %p171
      %p173 = scmp.ne.s32.totalorder %s165, %s168
      %p174 = scmp.eq.s32.totalorder %s18, 0
      %p175 = por %p173, %p174
      %p176 = scmp.ne.s32.totalorder %s165, %s168
      %p177 = scmp.eq.s32.totalorder %s23, 1
      %p178 = por %p176, %p177
      %p179 = scmp.ne.s32.totalorder %s168, %s169
      %p180 = scmp.eq.s32.totalorder %s23, 0
      %p181 = por %p179, %p180
      %p182 = scmp.ne.s32.totalorder %s168, %s169
      %p183 = scmp.eq.s32.totalorder %s24, 1
      %p184 = por %p182, %p183
      %p186 = scmp.ne.s32.totalorder %s169, %s185
      %p187 = scmp.eq.s32.totalorder %s24, 0
      %p188 = por %p186, %p187
      %p189 = scmp.le.s32.totalorder 1, %s18
      %p190 = scmp.lt.s32.totalorder %s18, 3
      %p191 = pnand %p189, %p190
      %p192 = pneg %p191
      // Predicated region
      $region9: #{feed_forward_block.1} parent=5 // pred_check
        _
      $region10: #{feed_forward_block.1} parent=5 // pred_check_branch
        %194 = sbr.rel (%p191) target = $region12
      $region11: #{feed_forward_block.1} parent=5 // pred_region
        %s195 = ssub.s32 %s18, 1
        // Predicated region
        $region13: #{feed_forward_block.1} parent=11 // pred_check
          %p196 = pneg %p82
        $region14: #{feed_forward_block.1} parent=11 // pred_check_branch
          %198 = sbr.rel (%p196) target = $region16
        $region15: #{feed_forward_block.1} parent=11 // pred_region
          %s199 = smul.u32 4, %s28
          %s201 = ssub.s32 8192, 8192
          %202 = vsyncadd [#allocation5], %s201
          %s203 = smul.addr %s199, 128
          %s204 = scalar_lea.hbm %s2, %s203
          %s205 = sshll.u32 [#allocation4], 4
          %s206 = int_to_ptr.vmem [resolvable:$true] %s205
          %211 = dma.hbm_to_vmem [thread:$0]  %s204, 8192, %s206, [#allocation5], 512, 512, 32
        $region16: #{feed_forward_block.1} parent=11 // pred_fallthru
          _
        // Predicated region
        $region17: #{feed_forward_block.1} parent=11 // pred_check
          %p212 = pneg %p108
        $region18: #{feed_forward_block.1} parent=11 // pred_check_branch
          %214 = sbr.rel (%p212) target = $region20
        $region19: #{feed_forward_block.1} parent=11 // pred_region
          %s215 = smul.u32 4, %s28
          %p216 = scmp.lt.s32.totalorder %s215, 3
          %s217 = scalar_select %p216, %s215, 3
          %s218 = scalar_lea.vmem %s3, %s217
          %s219 = smul.u32 4, %s28
        $region20: #{feed_forward_block.1} parent=11 // pred_fallthru
          _
        // Predicated region
        $region21: #{feed_forward_block.1} parent=11 // pred_check
          %p220 = pneg %p134
        $region22: #{feed_forward_block.1} parent=11 // pred_check_branch
          %222 = sbr.rel (%p220) target = $region24
        $region23: #{feed_forward_block.1} parent=11 // pred_region
          %s223 = smul.u32 64, %s28
          %s225 = ssub.s32 8192, 8192
          %226 = vsyncadd [#allocation8], %s225
          %s227 = smul.addr %s223, 128
          %s228 = scalar_lea.hbm %s4, %s227
          %s229 = sshll.u32 [#allocation7], 4
          %s230 = int_to_ptr.vmem [resolvable:$true] %s229
          %235 = dma.hbm_to_vmem [thread:$0]  %s228, 8192, %s230, [#allocation8], 128, 128, 8
        $region24: #{feed_forward_block.1} parent=11 // pred_fallthru
          _
        // Predicated region
        $region25: #{feed_forward_block.1} parent=11 // pred_check
          %p236 = pneg %p155
        $region26: #{feed_forward_block.1} parent=11 // pred_check_branch
          %238 = sbr.rel (%p236) target = $region28
        $region27: #{feed_forward_block.1} parent=11 // pred_region
          _
        $region28: #{feed_forward_block.1} parent=11 // pred_fallthru
          _
      $region12: #{feed_forward_block.1} parent=5 // pred_fallthru
        _
      %p239 = scmp.lt.s32.totalorder %s18, 2
      // Predicated region
      $region29: #{feed_forward_block.1} parent=5 // pred_check
        %p240 = pneg %p239
      $region30: #{feed_forward_block.1} parent=5 // pred_check_branch
        %242 = sbr.rel (%p240) target = $region32
      $region31: #{feed_forward_block.1} parent=5 // pred_region
        // Predicated region
        $region33: #{feed_forward_block.1} parent=31 // pred_check
          %p243 = pneg %p50
        $region34: #{feed_forward_block.1} parent=31 // pred_check_branch
          %245 = sbr.rel (%p243) target = $region36
        $region35: #{feed_forward_block.1} parent=31 // pred_region
          %p246 = scmp.lt.s32.totalorder %s25, 1
          %s247 = scalar_select %p246, %s25, 1
          %s248 = smul.addr %s247, 8
          %s249 = scalar_lea.vmem %s1, %s248
        $region36: #{feed_forward_block.1} parent=31 // pred_fallthru
          _
      $region32: #{feed_forward_block.1} parent=5 // pred_fallthru
        _
      %p250 = scmp.le.s32.totalorder 1, %s18
      %p251 = scmp.lt.s32.totalorder %s18, 3
      %p252 = pnand %p250, %p251
      %p253 = pneg %p252
      // Predicated region
      $region37: #{feed_forward_block.1} parent=5 // pred_check
        _
      $region38: #{feed_forward_block.1} parent=5 // pred_check_branch
        %255 = sbr.rel (%p252) target = $region40
      $region39: #{feed_forward_block.1} parent=5 // pred_region
        %s256 = ssub.s32 %s18, 1
        // Predicated region
        $region41: #{feed_forward_block.1} parent=39 // pred_check
          %p257 = pneg %p82
        $region42: #{feed_forward_block.1} parent=39 // pred_check_branch
          %259 = sbr.rel (%p257) target = $region44
        $region43: #{feed_forward_block.1} parent=39 // pred_region
          %260 = dma.done [#allocation5], 8192
        $region44: #{feed_forward_block.1} parent=39 // pred_fallthru
          _
        // Predicated region
        $region45: #{feed_forward_block.1} parent=39 // pred_check
          %p261 = pneg %p134
        $region46: #{feed_forward_block.1} parent=39 // pred_check_branch
          %263 = sbr.rel (%p261) target = $region48
        $region47: #{feed_forward_block.1} parent=39 // pred_region
          %264 = dma.done [#allocation8], 8192
        $region48: #{feed_forward_block.1} parent=39 // pred_fallthru
          _
        %p265 = scmp.lt.s32.totalorder %s27, 1
        %s266 = scalar_select %p265, %s27, 1
        %s267 = smul.addr %s266, 8
        %s268 = scalar_lea.vmem %s1, %s267
        %p269 = pneg %p56
        %p270 = pneg %p53
        %p271 = pneg %p82
        %p272 = pneg %p79
        %s273 = smul.u32 4, %s28
        %p274 = scmp.lt.s32.totalorder %s273, 3
        %s275 = scalar_select %p274, %s273, 3
        %s276 = scalar_lea.vmem %s3, %s275
        %p277 = pneg %p108
        %p278 = pneg %p105
        %p279 = pneg %p134
        %p280 = pneg %p131
        %p281 = pneg %p155
        %p282 = pneg %p152
        %p283 = pneg %p181
        %p284 = pneg %p178
        %s285 = sand.u32 %s168, 1
        %s286 = scalar_lea.sflag [#allocation6], %s285
        %s287 = sand.u32 %s168, 1
        %s288 = smul.addr %s287, 8
        %s289 = scalar_lea.vmem [#allocation9], %s288
        %p290 = scmp.lt.s32.totalorder %s27, 1
        %s291 = scalar_select %p290, %s27, 1
        %s292 = smul.addr %s291, 8
        %s293 = scalar_lea.vmem %s1, %s292
        %s294 = smul.u32 4, %s28
        %s295 = smul.u32 4, %s28
        %p296 = scmp.lt.s32.totalorder %s295, 3
        %s297 = scalar_select %p296, %s295, 3
        %s298 = scalar_lea.vmem %s3, %s297
        %s299 = smul.u32 4, %s28
        %s300 = smul.u32 64, %s28
        %v301 = vld [vmem:[%s293] sm:$0xff]
        %v302 = vld [vmem:[#allocation4] sm:$0xff]
        %v303 = vld [vmem:[#allocation4 + $0x8] sm:$0xff]
        %v304 = vld [vmem:[#allocation4 + $0x10] sm:$0xff]
        %v305 = vld [vmem:[#allocation4 + $0x18] sm:$0xff]
        %v306 = vld [vmem:[#allocation4 + $0x20] sm:$0xff]
        %v307 = vld [vmem:[#allocation4 + $0x28] sm:$0xff]
        %v308 = vld [vmem:[#allocation4 + $0x30] sm:$0xff]
        %v309 = vld [vmem:[#allocation4 + $0x38] sm:$0xff]
        %v310 = vld [vmem:[#allocation4 + $0x40] sm:$0xff]
        %v311 = vld [vmem:[#allocation4 + $0x48] sm:$0xff]
        %v312 = vld [vmem:[#allocation4 + $0x50] sm:$0xff]
        %v313 = vld [vmem:[#allocation4 + $0x58] sm:$0xff]
        %v314 = vld [vmem:[#allocation4 + $0x60] sm:$0xff]
        %v315 = vld [vmem:[#allocation4 + $0x68] sm:$0xff]
        %v316 = vld [vmem:[#allocation4 + $0x70] sm:$0xff]
        %v317 = vld [vmem:[#allocation4 + $0x78] sm:$0xff]
        %v318 = vld [vmem:[#allocation4 + $0x80] sm:$0xff]
        %v319 = vld [vmem:[#allocation4 + $0x88] sm:$0xff]
        %v320 = vld [vmem:[#allocation4 + $0x90] sm:$0xff]
        %v321 = vld [vmem:[#allocation4 + $0x98] sm:$0xff]
        %v322 = vld [vmem:[#allocation4 + $0xa0] sm:$0xff]
        %v323 = vld [vmem:[#allocation4 + $0xa8] sm:$0xff]
        %v324 = vld [vmem:[#allocation4 + $0xb0] sm:$0xff]
        %v325 = vld [vmem:[#allocation4 + $0xb8] sm:$0xff]
        %v326 = vld [vmem:[#allocation4 + $0xc0] sm:$0xff]
        %v327 = vld [vmem:[#allocation4 + $0xc8] sm:$0xff]
        %v328 = vld [vmem:[#allocation4 + $0xd0] sm:$0xff]
        %v329 = vld [vmem:[#allocation4 + $0xd8] sm:$0xff]
        %v330 = vld [vmem:[#allocation4 + $0xe0] sm:$0xff]
        %v331 = vld [vmem:[#allocation4 + $0xe8] sm:$0xff]
        %v332 = vld [vmem:[#allocation4 + $0xf0] sm:$0xff]
        %v333 = vld [vmem:[#allocation4 + $0xf8] sm:$0xff]
        %v334 = vld [vmem:[#allocation4 + $0x100] sm:$0xff]
        %v335 = vld [vmem:[#allocation4 + $0x108] sm:$0xff]
        %v336 = vld [vmem:[#allocation4 + $0x110] sm:$0xff]
        %v337 = vld [vmem:[#allocation4 + $0x118] sm:$0xff]
        %v338 = vld [vmem:[#allocation4 + $0x120] sm:$0xff]
        %v339 = vld [vmem:[#allocation4 + $0x128] sm:$0xff]
        %v340 = vld [vmem:[#allocation4 + $0x130] sm:$0xff]
        %v341 = vld [vmem:[#allocation4 + $0x138] sm:$0xff]
        %v342 = vld [vmem:[#allocation4 + $0x140] sm:$0xff]
        %v343 = vld [vmem:[#allocation4 + $0x148] sm:$0xff]
        %v344 = vld [vmem:[#allocation4 + $0x150] sm:$0xff]
        %v345 = vld [vmem:[#allocation4 + $0x158] sm:$0xff]
        %v346 = vld [vmem:[#allocation4 + $0x160] sm:$0xff]
        %v347 = vld [vmem:[#allocation4 + $0x168] sm:$0xff]
        %v348 = vld [vmem:[#allocation4 + $0x170] sm:$0xff]
        %v349 = vld [vmem:[#allocation4 + $0x178] sm:$0xff]
        %v350 = vld [vmem:[#allocation4 + $0x180] sm:$0xff]
        %v351 = vld [vmem:[#allocation4 + $0x188] sm:$0xff]
        %v352 = vld [vmem:[#allocation4 + $0x190] sm:$0xff]
        %v353 = vld [vmem:[#allocation4 + $0x198] sm:$0xff]
        %v354 = vld [vmem:[#allocation4 + $0x1a0] sm:$0xff]
        %v355 = vld [vmem:[#allocation4 + $0x1a8] sm:$0xff]
        %v356 = vld [vmem:[#allocation4 + $0x1b0] sm:$0xff]
        %v357 = vld [vmem:[#allocation4 + $0x1b8] sm:$0xff]
        %v358 = vld [vmem:[#allocation4 + $0x1c0] sm:$0xff]
        %v359 = vld [vmem:[#allocation4 + $0x1c8] sm:$0xff]
        %v360 = vld [vmem:[#allocation4 + $0x1d0] sm:$0xff]
        %v361 = vld [vmem:[#allocation4 + $0x1d8] sm:$0xff]
        %v362 = vld [vmem:[#allocation4 + $0x1e0] sm:$0xff]
        %v363 = vld [vmem:[#allocation4 + $0x1e8] sm:$0xff]
        %v364 = vld [vmem:[#allocation4 + $0x1f0] sm:$0xff]
        %v365 = vld [vmem:[#allocation4 + $0x1f8] sm:$0xff]
        %v366 = vld [vmem:[%s298] sm:$0xf]
        %v368 = vlaneseq
        %v369 = vshrl.u32 %v368, 7
        %v370 = vsub.s32 0, %v369
        %v371 = vrot.slane %v366, %v370
        %v372 = vlaneseq
        %v373 = vshrl.u32 %v372, 7
        %v374 = vsub.s32 1, %v373
        %v375 = vrot.slane %v366, %v374
        %v376 = vlaneseq
        %v377 = vshrl.u32 %v376, 7
        %v378 = vsub.s32 2, %v377
        %v379 = vrot.slane %v366, %v378
        %v380 = vlaneseq
        %v381 = vshrl.u32 %v380, 7
        %v382 = vsub.s32 3, %v381
        %v383 = vrot.slane %v366, %v382
        %388 = vmatprep.subr.mxu0 %v303
        %389 = vmatpush1.msra.mxu0 %v302
        %390 = vmatprep.subr.mxu0 %v307
        %391 = vmatpush1.msra.mxu0 %v306
        %392 = vmatprep.subr.mxu0 %v311
        %393 = vmatpush1.msra.mxu0 %v310
        %394 = vmatprep.subr.mxu0 %v315
        %395 = vmatpush1.msra.mxu0 %v314
        %396 = vmatprep.subr.mxu0 %v319
        %397 = vmatpush1.msra.mxu0 %v318
        %398 = vmatprep.subr.mxu0 %v323
        %399 = vmatpush1.msra.mxu0 %v322
        %400 = vmatprep.subr.mxu0 %v327
        %401 = vmatpush1.msra.mxu0 %v326
        %402 = vmatprep.subr.mxu0 %v331
        %403 = vmatpush1.msra.mxu0 %v330
        %404 = vmatprep.subr.mxu0 %v335
        %405 = vmatpush1.msra.mxu0 %v334
        %406 = vmatprep.subr.mxu0 %v339
        %407 = vmatpush1.msra.mxu0 %v338
        %408 = vmatprep.subr.mxu0 %v343
        %409 = vmatpush1.msra.mxu0 %v342
        %410 = vmatprep.subr.mxu0 %v347
        %411 = vmatpush1.msra.mxu0 %v346
        %412 = vmatprep.subr.mxu0 %v351
        %413 = vmatpush1.msra.mxu0 %v350
        %414 = vmatprep.subr.mxu0 %v355
        %415 = vmatpush1.msra.mxu0 %v354
        %416 = vmatprep.subr.mxu0 %v359
        %417 = vmatpush1.msra.mxu0 %v358
        %418 = vmatprep.subr.mxu0 %v363
        %419 = vmatpush1.msra.mxu0 %v362
        %420 = vmatprep.subr.mxu0 0.0
        %421 = vmatpush1.msra.mxu0 0.0
        %422 = vmatprep.subr.mxu0 0.0
        %423 = vmatpush1.msra.mxu0 0.0
        %424 = vmatprep.subr.mxu0 0.0
        %425 = vmatpush1.msra.mxu0 0.0
        %426 = vmatprep.subr.mxu0 0.0
        %427 = vmatpush1.msra.mxu0 0.0
        %428 = vmatprep.subr.mxu0 0.0
        %429 = vmatpush1.msra.mxu0 0.0
        %430 = vmatprep.subr.mxu0 0.0
        %431 = vmatpush1.msra.mxu0 0.0
        %432 = vmatprep.subr.mxu0 0.0
        %433 = vmatpush1.msra.mxu0 0.0
        %434 = vmatprep.subr.mxu0 0.0
        %435 = vmatpush1.msra.mxu0 0.0
        %436 = vmatprep.subr.mxu0 0.0
        %437 = vmatpush1.msra.mxu0 0.0
        %438 = vmatprep.subr.mxu0 0.0
        %439 = vmatpush1.msra.mxu0 0.0
        %440 = vmatprep.subr.mxu0 0.0
        %441 = vmatpush1.msra.mxu0 0.0
        %442 = vmatprep.subr.mxu0 0.0
        %443 = vmatpush1.msra.mxu0 0.0
        %444 = vmatprep.subr.mxu0 0.0
        %445 = vmatpush1.msra.mxu0 0.0
        %446 = vmatprep.subr.mxu0 0.0
        %447 = vmatpush1.msra.mxu0 0.0
        %448 = vmatprep.subr.mxu0 0.0
        %449 = vmatpush1.msra.mxu0 0.0
        %450 = vmatprep.subr.mxu0 0.0
        %451 = vmatpush1.msra.mxu0 0.0
        %452 = vmatprep.mubr.f32.mxu0 0.0
        %453 = vmatmul.mubr.f32.gmra.mrb[0].mxu0 %v301
        %v454 = vpop.f32.mrb[0].mxu0
        %v455 = vadd.f32 %v371, %v454
        %v456 = vpop.f32.mrb[0].mxu0
        %v457 = vadd.f32 %v375, %v456
        %458 = vdwg.mxu0
        %459 = vmatprep.subr.mxu0 %v305
        %460 = vmatpush1.msra.mxu0 %v304
        %461 = vmatprep.subr.mxu0 %v309
        %462 = vmatpush1.msra.mxu0 %v308
        %463 = vmatprep.subr.mxu0 %v313
        %464 = vmatpush1.msra.mxu0 %v312
        %465 = vmatprep.subr.mxu0 %v317
        %466 = vmatpush1.msra.mxu0 %v316
        %467 = vmatprep.subr.mxu0 %v321
        %468 = vmatpush1.msra.mxu0 %v320
        %469 = vmatprep.subr.mxu0 %v325
        %470 = vmatpush1.msra.mxu0 %v324
        %471 = vmatprep.subr.mxu0 %v329
        %472 = vmatpush1.msra.mxu0 %v328
        %473 = vmatprep.subr.mxu0 %v333
        %474 = vmatpush1.msra.mxu0 %v332
        %475 = vmatprep.subr.mxu0 %v337
        %476 = vmatpush1.msra.mxu0 %v336
        %477 = vmatprep.subr.mxu0 %v341
        %478 = vmatpush1.msra.mxu0 %v340
        %479 = vmatprep.subr.mxu0 %v345
        %480 = vmatpush1.msra.mxu0 %v344
        %481 = vmatprep.subr.mxu0 %v349
        %482 = vmatpush1.msra.mxu0 %v348
        %483 = vmatprep.subr.mxu0 %v353
        %484 = vmatpush1.msra.mxu0 %v352
        %485 = vmatprep.subr.mxu0 %v357
        %486 = vmatpush1.msra.mxu0 %v356
        %487 = vmatprep.subr.mxu0 %v361
        %488 = vmatpush1.msra.mxu0 %v360
        %489 = vmatprep.subr.mxu0 %v365
        %490 = vmatpush1.msra.mxu0 %v364
        %491 = vmatprep.subr.mxu0 0.0
        %492 = vmatpush1.msra.mxu0 0.0
        %493 = vmatprep.subr.mxu0 0.0
        %494 = vmatpush1.msra.mxu0 0.0
        %495 = vmatprep.subr.mxu0 0.0
        %496 = vmatpush1.msra.mxu0 0.0
        %497 = vmatprep.subr.mxu0 0.0
        %498 = vmatpush1.msra.mxu0 0.0
        %499 = vmatprep.subr.mxu0 0.0
        %500 = vmatpush1.msra.mxu0 0.0
        %501 = vmatprep.subr.mxu0 0.0
        %502 = vmatpush1.msra.mxu0 0.0
        %503 = vmatprep.subr.mxu0 0.0
        %504 = vmatpush1.msra.mxu0 0.0
        %505 = vmatprep.subr.mxu0 0.0
        %506 = vmatpush1.msra.mxu0 0.0
        %507 = vmatprep.subr.mxu0 0.0
        %508 = vmatpush1.msra.mxu0 0.0
        %509 = vmatprep.subr.mxu0 0.0
        %510 = vmatpush1.msra.mxu0 0.0
        %511 = vmatprep.subr.mxu0 0.0
        %512 = vmatpush1.msra.mxu0 0.0
        %513 = vmatprep.subr.mxu0 0.0
        %514 = vmatpush1.msra.mxu0 0.0
        %515 = vmatprep.subr.mxu0 0.0
        %516 = vmatpush1.msra.mxu0 0.0
        %517 = vmatprep.subr.mxu0 0.0
        %518 = vmatpush1.msra.mxu0 0.0
        %519 = vmatprep.subr.mxu0 0.0
        %520 = vmatpush1.msra.mxu0 0.0
        %521 = vmatprep.subr.mxu0 0.0
        %522 = vmatpush1.msra.mxu0 0.0
        %523 = vmatprep.mubr.f32.mxu0 0.0
        %524 = vmatmul.mubr.f32.gmra.mrb[0].mxu0 %v301
        %v525 = vpop.f32.mrb[0].mxu0
        %v526 = vadd.f32 %v379, %v525
        %v527 = vpop.f32.mrb[0].mxu0
        %v528 = vadd.f32 %v383, %v527
        %529 = vdwg.mxu0
        %v530 = vmax.f32 %v455, 0.0
        %v531 = vmax.f32 %v457, 0.0
        %v532 = vmax.f32 %v526, 0.0
        %v533 = vmax.f32 %v528, 0.0
        %v534 = vld [vmem:[#allocation7] sm:$0xff]
        %v535 = vld [vmem:[#allocation7 + $0x8] sm:$0xff]
        %v536 = vld [vmem:[#allocation7 + $0x10] sm:$0xff]
        %v537 = vld [vmem:[#allocation7 + $0x18] sm:$0xff]
        %v538 = vld [vmem:[#allocation7 + $0x20] sm:$0xff]
        %v539 = vld [vmem:[#allocation7 + $0x28] sm:$0xff]
        %v540 = vld [vmem:[#allocation7 + $0x30] sm:$0xff]
        %v541 = vld [vmem:[#allocation7 + $0x38] sm:$0xff]
        %v542 = vld [vmem:[#allocation7 + $0x40] sm:$0xff]
        %v543 = vld [vmem:[#allocation7 + $0x48] sm:$0xff]
        %v544 = vld [vmem:[#allocation7 + $0x50] sm:$0xff]
        %v545 = vld [vmem:[#allocation7 + $0x58] sm:$0xff]
        %v546 = vld [vmem:[#allocation7 + $0x60] sm:$0xff]
        %v547 = vld [vmem:[#allocation7 + $0x68] sm:$0xff]
        %v548 = vld [vmem:[#allocation7 + $0x70] sm:$0xff]
        %v549 = vld [vmem:[#allocation7 + $0x78] sm:$0xff]
        %v550 = vld [vmem:[#allocation7 + $0x80] sm:$0xff]
        %v551 = vld [vmem:[#allocation7 + $0x88] sm:$0xff]
        %v552 = vld [vmem:[#allocation7 + $0x90] sm:$0xff]
        %v553 = vld [vmem:[#allocation7 + $0x98] sm:$0xff]
        %v554 = vld [vmem:[#allocation7 + $0xa0] sm:$0xff]
        %v555 = vld [vmem:[#allocation7 + $0xa8] sm:$0xff]
        %v556 = vld [vmem:[#allocation7 + $0xb0] sm:$0xff]
        %v557 = vld [vmem:[#allocation7 + $0xb8] sm:$0xff]
        %v558 = vld [vmem:[#allocation7 + $0xc0] sm:$0xff]
        %v559 = vld [vmem:[#allocation7 + $0xc8] sm:$0xff]
        %v560 = vld [vmem:[#allocation7 + $0xd0] sm:$0xff]
        %v561 = vld [vmem:[#allocation7 + $0xd8] sm:$0xff]
        %v562 = vld [vmem:[#allocation7 + $0xe0] sm:$0xff]
        %v563 = vld [vmem:[#allocation7 + $0xe8] sm:$0xff]
        %v564 = vld [vmem:[#allocation7 + $0xf0] sm:$0xff]
        %v565 = vld [vmem:[#allocation7 + $0xf8] sm:$0xff]
        %v566 = vld [vmem:[#allocation7 + $0x100] sm:$0xff]
        %v567 = vld [vmem:[#allocation7 + $0x108] sm:$0xff]
        %v568 = vld [vmem:[#allocation7 + $0x110] sm:$0xff]
        %v569 = vld [vmem:[#allocation7 + $0x118] sm:$0xff]
        %v570 = vld [vmem:[#allocation7 + $0x120] sm:$0xff]
        %v571 = vld [vmem:[#allocation7 + $0x128] sm:$0xff]
        %v572 = vld [vmem:[#allocation7 + $0x130] sm:$0xff]
        %v573 = vld [vmem:[#allocation7 + $0x138] sm:$0xff]
        %v574 = vld [vmem:[#allocation7 + $0x140] sm:$0xff]
        %v575 = vld [vmem:[#allocation7 + $0x148] sm:$0xff]
        %v576 = vld [vmem:[#allocation7 + $0x150] sm:$0xff]
        %v577 = vld [vmem:[#allocation7 + $0x158] sm:$0xff]
        %v578 = vld [vmem:[#allocation7 + $0x160] sm:$0xff]
        %v579 = vld [vmem:[#allocation7 + $0x168] sm:$0xff]
        %v580 = vld [vmem:[#allocation7 + $0x170] sm:$0xff]
        %v581 = vld [vmem:[#allocation7 + $0x178] sm:$0xff]
        %v582 = vld [vmem:[#allocation7 + $0x180] sm:$0xff]
        %v583 = vld [vmem:[#allocation7 + $0x188] sm:$0xff]
        %v584 = vld [vmem:[#allocation7 + $0x190] sm:$0xff]
        %v585 = vld [vmem:[#allocation7 + $0x198] sm:$0xff]
        %v586 = vld [vmem:[#allocation7 + $0x1a0] sm:$0xff]
        %v587 = vld [vmem:[#allocation7 + $0x1a8] sm:$0xff]
        %v588 = vld [vmem:[#allocation7 + $0x1b0] sm:$0xff]
        %v589 = vld [vmem:[#allocation7 + $0x1b8] sm:$0xff]
        %v590 = vld [vmem:[#allocation7 + $0x1c0] sm:$0xff]
        %v591 = vld [vmem:[#allocation7 + $0x1c8] sm:$0xff]
        %v592 = vld [vmem:[#allocation7 + $0x1d0] sm:$0xff]
        %v593 = vld [vmem:[#allocation7 + $0x1d8] sm:$0xff]
        %v594 = vld [vmem:[#allocation7 + $0x1e0] sm:$0xff]
        %v595 = vld [vmem:[#allocation7 + $0x1e8] sm:$0xff]
        %v596 = vld [vmem:[#allocation7 + $0x1f0] sm:$0xff]
        %v597 = vld [vmem:[#allocation7 + $0x1f8] sm:$0xff]
        %v598 = vld [vmem:[%s5] sm:$0x1]
        %v600 = vlaneseq
        %v601 = vshrl.u32 %v600, 7
        %v602 = vsub.s32 0, %v601
        %v603 = vrot.slane %v598, %v602
        %605 = vmatprep.subr.mxu0 0.0
        %606 = vmatpush1.msra.mxu0 %v534
        %607 = vmatprep.subr.mxu0 0.0
        %608 = vmatpush1.msra.mxu0 %v535
        %609 = vmatprep.subr.mxu0 0.0
        %610 = vmatpush1.msra.mxu0 %v536
        %611 = vmatprep.subr.mxu0 0.0
        %612 = vmatpush1.msra.mxu0 %v537
        %613 = vmatprep.subr.mxu0 0.0
        %614 = vmatpush1.msra.mxu0 %v538
        %615 = vmatprep.subr.mxu0 0.0
        %616 = vmatpush1.msra.mxu0 %v539
        %617 = vmatprep.subr.mxu0 0.0
        %618 = vmatpush1.msra.mxu0 %v540
        %619 = vmatprep.subr.mxu0 0.0
        %620 = vmatpush1.msra.mxu0 %v541
        %621 = vmatprep.subr.mxu0 0.0
        %622 = vmatpush1.msra.mxu0 %v542
        %623 = vmatprep.subr.mxu0 0.0
        %624 = vmatpush1.msra.mxu0 %v543
        %625 = vmatprep.subr.mxu0 0.0
        %626 = vmatpush1.msra.mxu0 %v544
        %627 = vmatprep.subr.mxu0 0.0
        %628 = vmatpush1.msra.mxu0 %v545
        %629 = vmatprep.subr.mxu0 0.0
        %630 = vmatpush1.msra.mxu0 %v546
        %631 = vmatprep.subr.mxu0 0.0
        %632 = vmatpush1.msra.mxu0 %v547
        %633 = vmatprep.subr.mxu0 0.0
        %634 = vmatpush1.msra.mxu0 %v548
        %635 = vmatprep.subr.mxu0 0.0
        %636 = vmatpush1.msra.mxu0 %v549
        %637 = vmatprep.subr.mxu0 0.0
        %638 = vmatpush1.msra.mxu0 %v550
        %639 = vmatprep.subr.mxu0 0.0
        %640 = vmatpush1.msra.mxu0 %v551
        %641 = vmatprep.subr.mxu0 0.0
        %642 = vmatpush1.msra.mxu0 %v552
        %643 = vmatprep.subr.mxu0 0.0
        %644 = vmatpush1.msra.mxu0 %v553
        %645 = vmatprep.subr.mxu0 0.0
        %646 = vmatpush1.msra.mxu0 %v554
        %647 = vmatprep.subr.mxu0 0.0
        %648 = vmatpush1.msra.mxu0 %v555
        %649 = vmatprep.subr.mxu0 0.0
        %650 = vmatpush1.msra.mxu0 %v556
        %651 = vmatprep.subr.mxu0 0.0
        %652 = vmatpush1.msra.mxu0 %v557
        %653 = vmatprep.subr.mxu0 0.0
        %654 = vmatpush1.msra.mxu0 %v558
        %655 = vmatprep.subr.mxu0 0.0
        %656 = vmatpush1.msra.mxu0 %v559
        %657 = vmatprep.subr.mxu0 0.0
        %658 = vmatpush1.msra.mxu0 %v560
        %659 = vmatprep.subr.mxu0 0.0
        %660 = vmatpush1.msra.mxu0 %v561
        %661 = vmatprep.subr.mxu0 0.0
        %662 = vmatpush1.msra.mxu0 %v562
        %663 = vmatprep.subr.mxu0 0.0
        %664 = vmatpush1.msra.mxu0 %v563
        %665 = vmatprep.subr.mxu0 0.0
        %666 = vmatpush1.msra.mxu0 %v564
        %667 = vmatprep.subr.mxu0 0.0
        %668 = vmatpush1.msra.mxu0 %v565
        %669 = vmatprep.mubr.f32.mxu0 %v531
        %670 = vmatmul.mubr.f32.gmra.mrb[0].mxu0 %v530
        %v671 = vpop.f32.mrb[0].mxu0
        %v672 = vadd.f32 %v603, %v671
        %v673 = vpop.f32.mrb[0].mxu0
        %674 = vdwg.mxu0
        %675 = vmatprep.subr.mxu0 0.0
        %676 = vmatpush1.msra.mxu0 %v566
        %677 = vmatprep.subr.mxu0 0.0
        %678 = vmatpush1.msra.mxu0 %v567
        %679 = vmatprep.subr.mxu0 0.0
        %680 = vmatpush1.msra.mxu0 %v568
        %681 = vmatprep.subr.mxu0 0.0
        %682 = vmatpush1.msra.mxu0 %v569
        %683 = vmatprep.subr.mxu0 0.0
        %684 = vmatpush1.msra.mxu0 %v570
        %685 = vmatprep.subr.mxu0 0.0
        %686 = vmatpush1.msra.mxu0 %v571
        %687 = vmatprep.subr.mxu0 0.0
        %688 = vmatpush1.msra.mxu0 %v572
        %689 = vmatprep.subr.mxu0 0.0
        %690 = vmatpush1.msra.mxu0 %v573
        %691 = vmatprep.subr.mxu0 0.0
        %692 = vmatpush1.msra.mxu0 %v574
        %693 = vmatprep.subr.mxu0 0.0
        %694 = vmatpush1.msra.mxu0 %v575
        %695 = vmatprep.subr.mxu0 0.0
        %696 = vmatpush1.msra.mxu0 %v576
        %697 = vmatprep.subr.mxu0 0.0
        %698 = vmatpush1.msra.mxu0 %v577
        %699 = vmatprep.subr.mxu0 0.0
        %700 = vmatpush1.msra.mxu0 %v578
        %701 = vmatprep.subr.mxu0 0.0
        %702 = vmatpush1.msra.mxu0 %v579
        %703 = vmatprep.subr.mxu0 0.0
        %704 = vmatpush1.msra.mxu0 %v580
        %705 = vmatprep.subr.mxu0 0.0
        %706 = vmatpush1.msra.mxu0 %v581
        %707 = vmatprep.subr.mxu0 0.0
        %708 = vmatpush1.msra.mxu0 %v582
        %709 = vmatprep.subr.mxu0 0.0
        %710 = vmatpush1.msra.mxu0 %v583
        %711 = vmatprep.subr.mxu0 0.0
        %712 = vmatpush1.msra.mxu0 %v584
        %713 = vmatprep.subr.mxu0 0.0
        %714 = vmatpush1.msra.mxu0 %v585
        %715 = vmatprep.subr.mxu0 0.0
        %716 = vmatpush1.msra.mxu0 %v586
        %717 = vmatprep.subr.mxu0 0.0
        %718 = vmatpush1.msra.mxu0 %v587
        %719 = vmatprep.subr.mxu0 0.0
        %720 = vmatpush1.msra.mxu0 %v588
        %721 = vmatprep.subr.mxu0 0.0
        %722 = vmatpush1.msra.mxu0 %v589
        %723 = vmatprep.subr.mxu0 0.0
        %724 = vmatpush1.msra.mxu0 %v590
        %725 = vmatprep.subr.mxu0 0.0
        %726 = vmatpush1.msra.mxu0 %v591
        %727 = vmatprep.subr.mxu0 0.0
        %728 = vmatpush1.msra.mxu0 %v592
        %729 = vmatprep.subr.mxu0 0.0
        %730 = vmatpush1.msra.mxu0 %v593
        %731 = vmatprep.subr.mxu0 0.0
        %732 = vmatpush1.msra.mxu0 %v594
        %733 = vmatprep.subr.mxu0 0.0
        %734 = vmatpush1.msra.mxu0 %v595
        %735 = vmatprep.subr.mxu0 0.0
        %736 = vmatpush1.msra.mxu0 %v596
        %737 = vmatprep.subr.mxu0 0.0
        %738 = vmatpush1.msra.mxu0 %v597
        %739 = vmatprep.mubr.f32.mxu0 %v533
        %740 = vmatmul.mubr.f32.gmra.mrb[0].mxu0 %v532
        %v741 = vpop.f32.mrb[0].mxu0
        %v742 = vadd.f32 %v672, %v741
        %v743 = vpop.f32.mrb[0].mxu0
        %744 = vdwg.mxu0
        %745 = vst [vmem:[%s289] sm:$0xff] %v742
        %s746 = sand.u32 %s168, 1
        %s747 = scalar_lea.sflag [#allocation6], %s746
        %s748 = sand.u32 %s168, 1
        %s749 = smul.addr %s748, 8
        %s750 = scalar_lea.vmem [#allocation9], %s749
        // Predicated region
        $region49: #{feed_forward_block.1} parent=39 // pred_check
          %p751 = pneg %p178
        $region50: #{feed_forward_block.1} parent=39 // pred_check_branch
          %753 = sbr.rel (%p751) target = $region52
        $region51: #{feed_forward_block.1} parent=39 // pred_region
          %s755 = ssub.s32 128, 128
          %756 = vsyncadd %s747, %s755
          %s757 = smul.addr %s27, 128
          %s758 = scalar_lea.hbm %s6, %s757
          %s760 = sshll.u32 %s750, 4
          %s761 = int_to_ptr.vmem [resolvable:$true] %s760
          %763 = dma.vmem_to_hbm [thread:$0]  %s761, 128, %s758, %s747
        $region52: #{feed_forward_block.1} parent=39 // pred_fallthru
          _
      $region40: #{feed_forward_block.1} parent=5 // pred_fallthru
        _
      %p764 = scmp.le.s32.totalorder 2, %s18
      // Predicated region
      $region53: #{feed_forward_block.1} parent=5 // pred_check
        %p765 = pneg %p764
      $region54: #{feed_forward_block.1} parent=5 // pred_check_branch
        %767 = sbr.rel (%p765) target = $region56
      $region55: #{feed_forward_block.1} parent=5 // pred_region
        %s768 = ssub.s32 %s18, 2
        // Predicated region
        $region57: #{feed_forward_block.1} parent=55 // pred_check
          %p769 = pneg %p184
        $region58: #{feed_forward_block.1} parent=55 // pred_check_branch
          %771 = sbr.rel (%p769) target = $region60
        $region59: #{feed_forward_block.1} parent=55 // pred_region
          %s772 = sand.u32 %s169, 1
          %s773 = scalar_lea.sflag [#allocation6], %s772
          %s774 = sand.u32 %s169, 1
          %s775 = smul.addr %s774, 8
          %s776 = scalar_lea.vmem [#allocation9], %s775
          %777 = dma.done %s773, 128
        $region60: #{feed_forward_block.1} parent=55 // pred_fallthru
          _
      $region56: #{feed_forward_block.1} parent=5 // pred_fallthru
        _
    $region6: #{feed_forward_block.1} parent=1 // loop_footer
      %s22 = sadd.s32 1, %s18
    $region7: #{feed_forward_block.1} parent=1 // loop_footer_branch
      %17 = sbr.rel target = $region3
    $region8: #{feed_forward_block.1} parent=1 // loop_exit
      _
    %778 = vsyncpa [#allocation5], 1
    %s779 = scalar_lea.sflag [#allocation5], 1
    %780 = vsyncpa %s779, 1
    %781 = vsyncpa [#allocation8], 1
    %782 = vsyncpa [#allocation6], 1
    %s783 = scalar_lea.sflag [#allocation6], 1
    %784 = vsyncpa %s783, 1

</llo_original>
